<compile_context>
chip_gen: v5e
topology: v5e:2x2
jax: 0.10.0
libtpu: 0.0.40
codegen_flags: <defaults>
</compile_context>

<pallas_src>
import functools

import jax
import jax.numpy as jnp
import numpy as np
from jax.experimental import pallas as pl
from jax.experimental.pallas import tpu as pltpu

_EPS = 1e-8            # kept only in the pure-JAX reference (faithful to torch)
_ROW_ALIGN = 8
_MAX_BLOCK_ROWS = 512  # ~85% of HBM roofline already; bigger buys ~1%
_F32_TEMPS = 6         # full-tile f32 intermediates kept live in the kernel
_MIN_GRID_STEPS = 8    # pipelining depth + v7x megacore sharding


def _make_js_div_kernel(pad_rows, fold_lanes):
    """Builds the per-block partial-sum kernel (pad_rows/fold_lanes static)."""

    def kernel(x_ref, y_ref, out_ref):
        xs = x_ref[...].astype(jnp.float32)
        ys = y_ref[...].astype(jnp.float32)
        # Note: the module's "+ eps" before log_softmax cancels exactly
        # (softmax is shift-invariant), so it is omitted here.

        # Numerically stable log_softmax over the last (lane) axis.
        xc = xs - jnp.max(xs, axis=-1, keepdims=True)
        lx = xc - jnp.log(jnp.sum(jnp.exp(xc), axis=-1, keepdims=True))
        yc = ys - jnp.max(ys, axis=-1, keepdims=True)
        ly = yc - jnp.log(jnp.sum(jnp.exp(yc), axis=-1, keepdims=True))

        # m is the (log-space) average, exactly as in the PyTorch module.
        m = 0.5 * (lx + ly)

        # nn.KLDivLoss pointwise (log_target=False): xlogy(m, m) - m*input.
        # The where keeps xlogy(0, 0) == 0 semantics.
        xlogy_m = jnp.where(m == 0.0, jnp.float32(0.0), m * jnp.log(m))
        # (xlogy_m - m*lx) + (xlogy_m - m*ly) == 2*(xlogy_m - m*m)  (lx+ly=2m)
        term = 2.0 * (xlogy_m - m * m)

        br, n = term.shape
        if pad_rows:  # static: only compiled in when the wrapper padded B
            row = jax.lax.broadcasted_iota(jnp.int32, term.shape, 0)
            limit = jnp.where(pl.program_id(0) == pl.num_programs(0) - 1,
                              br - pad_rows, br)
            term = jnp.where(row < limit, term, jnp.float32(0.0))

        # Fold rows onto 8 sublanes — cross-vreg VALU adds, no XLU reduce and
        # no vector->SMEM round trip in the grid loop.
        part = jnp.sum(term.reshape(br // 8, 8, n), axis=0)
        if fold_lanes:  # static: large N that is a multiple of 128
            # Fold lane groups down to a single (8, 128) tile: shrinks the
            # per-block HBM writeback while staying lane-dense (unmasked vst).
            part = jnp.sum(part.reshape(8, n // 128, 128), axis=1)
        out_ref[...] = part

    return kernel


def _vmem_capacity_bytes():
    try:
        return int(pltpu.get_tpu_info().vmem_capacity_bytes)
    except Exception:
        return 64 << 20  # most conservative per-TC VMEM (v7x)


def _pick_block_rows(B, N, itemsize):
    """Largest row tile that (a) is a multiple of 8, (b) fits a conservative
    per-TensorCore VMEM budget including the ~6 full-tile f32 temporaries,
    and (c) leaves the grid with enough steps for pipelining / v7x megacore."""
    per_row = 2 * 2 * N * itemsize + _F32_TEMPS * N * 4  # inputs x2 buf + temps
    budget = min(_vmem_capacity_bytes() // 3, 20 << 20)
    rows = min(int(budget // max(per_row, 1)), _MAX_BLOCK_ROWS)
    # Never let the grid collapse: keep >= _MIN_GRID_STEPS blocks when the
    # batch allows it (v7x megacore sharding + DMA/compute overlap).
    if B >= _MIN_GRID_STEPS * _ROW_ALIGN:
        rows = min(rows, B // _MIN_GRID_STEPS)
    elif B >= 2 * _ROW_ALIGN:
        rows = min(rows, -(-B // 2))
    rows = max(_ROW_ALIGN, (rows // _ROW_ALIGN) * _ROW_ALIGN)
    return rows
    # TODO(synk): huge-N inputs (N*40 bytes/row * 8 rows > VMEM) need an
    # N-tiled online-logsumexp path; currently they would fail to compile.


def js_divergence(x, y, *, block_rows=None):
    """Pallas JS-divergence loss. x, y: (B, N) arrays -> scalar f32."""
    assert x.shape == y.shape and x.ndim == 2
    B, N = x.shape
    itemsize = jnp.dtype(x.dtype).itemsize

    if block_rows is None:
        block_rows = _pick_block_rows(B, N, itemsize)
    else:
        block_rows = max(_ROW_ALIGN,
                         ((int(block_rows) + _ROW_ALIGN - 1) // _ROW_ALIGN)
                         * _ROW_ALIGN)

    num_blocks = -(-B // block_rows)
    B_pad = num_blocks * block_rows
    pad_rows = B_pad - B
    if pad_rows:
        # Ragged batch: one cheap XLA pad in the wrapper; the pad rows'
        # contribution is masked inside the kernel and the true B*N
        # denominator is used below.
        x = jnp.pad(x, ((0, pad_rows), (0, 0)))
        y = jnp.pad(y, ((0, pad_rows), (0, 0)))

    fold_lanes = (N % 128 == 0) and (N > 128)
    out_lanes = 128 if fold_lanes else N

    # VMEM budgeting: inputs (double-buffered) + in-kernel f32 temporaries,
    # clamped to a per-TensorCore-safe ceiling (v7x: 64 MiB per TC; the info
    # query may report chip-level capacity, so never assume more than 64 MiB).
    in_work = block_rows * (2 * 2 * N * itemsize + _F32_TEMPS * N * 4)
    out_bytes = 2 * 8 * out_lanes * 4
    safe_cap = min(_vmem_capacity_bytes(), 64 << 20)
    vmem_limit = int(max(32 << 20,
                         min(safe_cap - (4 << 20),
                             in_work + out_bytes + (8 << 20))))

    cost = pl.CostEstimate(
        flops=16 * B_pad * N,
        transcendentals=3 * B_pad * N,
        bytes_accessed=2 * B_pad * N * itemsize + 8 * num_blocks * out_lanes * 4,
    )

    kernel = _make_js_div_kernel(pad_rows, fold_lanes)

    partials = pl.pallas_call(
        kernel,
        out_shape=jax.ShapeDtypeStruct((8 * num_blocks, out_lanes), jnp.float32),
        grid_spec=pltpu.PrefetchScalarGridSpec(
            num_scalar_prefetch=0,
            grid=(num_blocks,),
            in_specs=[
                pl.BlockSpec((block_rows, N), lambda i: (i, 0)),
                pl.BlockSpec((block_rows, N), lambda i: (i, 0)),
            ],
            out_specs=pl.BlockSpec((8, out_lanes), lambda i: (i, 0)),
        ),
        compiler_params=pltpu.CompilerParams(
            dimension_semantics=("parallel",),
            vmem_limit_bytes=vmem_limit,
        ),
        cost_estimate=cost,
    )(x, y)

    # reduction='mean' over all elements; JS = 0.5*(KL(x,m)+KL(y,m)).
    return 0.5 * jnp.sum(partials) / jnp.float32(B * N)


def js_divergence_ref(x, y):
    """Pure-JAX reference mirroring the PyTorch module exactly (incl. eps)."""
    lx = jax.nn.log_softmax(x.astype(jnp.float32) + _EPS, axis=-1)
    ly = jax.nn.log_softmax(y.astype(jnp.float32) + _EPS, axis=-1)
    m = 0.5 * (lx + ly)
    xlogy_m = jnp.where(m == 0.0, 0.0, m * jnp.log(m))
    kl_x = jnp.mean(xlogy_m - m * lx)
    kl_y = jnp.mean(xlogy_m - m * ly)
    return 0.5 * (kl_x + kl_y)


def _check(out, ref):
    assert np.allclose(np.asarray(out), np.asarray(ref),
                       atol=1e-5, equal_nan=True), (out, ref)


if __name__ == "__main__":
    key = jax.random.PRNGKey(0)
    kx, ky = jax.random.split(key)

    # Small, (8,128)-aligned shape consistent with nn.LogSoftmax() on 2-D input.
    B, N = 16, 128
    x = jax.random.normal(kx, (B, N), dtype=jnp.float32)
    y = jax.random.normal(ky, (B, N), dtype=jnp.float32)
    out = jax.block_until_ready(js_divergence(x, y))
    ref = jax.block_until_ready(js_divergence_ref(x, y))
    # The module (and hence both ref and kernel) yields NaN for ordinary
    # inputs: the averaged log-probs are negative KLDivLoss targets.
    _check(out, ref)

    # Multi-block auto-tiled path (grid >= 8 'parallel' steps).
    B2, N2 = 64, 128
    x2 = jax.random.normal(kx, (B2, N2), dtype=jnp.float32)
    y2 = jax.random.normal(ky, (B2, N2), dtype=jnp.float32)
    _check(jax.block_until_ready(js_divergence(x2, y2)),
           jax.block_until_ready(js_divergence_ref(x2, y2)))

    # Ragged batch (wrapper-side pad + in-kernel mask of the pad rows).
    B3, N3 = 52, 128
    x3 = jax.random.normal(kx, (B3, N3), dtype=jnp.float32)
    y3 = jax.random.normal(ky, (B3, N3), dtype=jnp.float32)
    _check(jax.block_until_ready(js_divergence(x3, y3, block_rows=16)),
           jax.block_until_ready(js_divergence_ref(x3, y3)))

    # Lane-folded partials (N a multiple of 128, > 128) + bf16 inputs
    # (halves the HBM read on the mem-bound path; math stays f32 in-kernel).
    B4, N4 = 24, 256
    x4 = jax.random.normal(kx, (B4, N4), dtype=jnp.float32).astype(jnp.bfloat16)
    y4 = jax.random.normal(ky, (B4, N4), dtype=jnp.float32).astype(jnp.bfloat16)
    _check(jax.block_until_ready(js_divergence(x4, y4, block_rows=8)),
           jax.block_until_ready(js_divergence_ref(x4, y4)))

    print("KERNEL_OK")
</pallas_src>

<mosaic_0001>
module attributes {stable_mosaic.version = 11 : i64} {
  func.func @kernel(%arg0: i32, %arg1: memref<8x128xf32, #tpu.memory_space<vmem>>, %arg2: memref<8x128xf32, #tpu.memory_space<vmem>>, %arg3: memref<8x128xf32, #tpu.memory_space<vmem>>) attributes {dimension_semantics = [#tpu.dimension_semantics<parallel>], iteration_bounds = array<i64: 2>, scalar_prefetch = 0 : i64, scratch_operands = 0 : i64, tpu.core_type = #tpu.core_type<tc>, window_params = [{transform_indices = @transform_0, window_bounds = array<i64: 8, 128>}, {transform_indices = @transform_1, window_bounds = array<i64: 8, 128>}, {transform_indices = @transform_2, window_bounds = array<i64: 8, 128>}]} {
    %c0 = arith.constant 0 : index
    %c0_0 = arith.constant 0 : index
    %0 = vector.load %arg1[%c0, %c0_0] : memref<8x128xf32, #tpu.memory_space<vmem>>, vector<8x128xf32>
    %c0_1 = arith.constant 0 : index
    %c0_2 = arith.constant 0 : index
    %1 = vector.load %arg2[%c0_1, %c0_2] : memref<8x128xf32, #tpu.memory_space<vmem>>, vector<8x128xf32>
    %cst = arith.constant dense<0xFF800000> : vector<8xf32>
    %2 = vector.multi_reduction <maximumf>, %0, %cst [1] : vector<8x128xf32> to vector<8xf32>
    %3 = vector.shape_cast %2 : vector<8xf32> to vector<8x1xf32>
    %4 = vector.broadcast %3 : vector<8x1xf32> to vector<8x128xf32>
    %5 = arith.subf %0, %4 : vector<8x128xf32>
    %6 = math.exp %5 : vector<8x128xf32>
    %cst_3 = arith.constant dense<0.000000e+00> : vector<8xf32>
    %7 = vector.multi_reduction <add>, %6, %cst_3 [1] : vector<8x128xf32> to vector<8xf32>
    %8 = vector.shape_cast %7 : vector<8xf32> to vector<8x1xf32>
    %9 = math.log %8 : vector<8x1xf32>
    %10 = vector.broadcast %9 : vector<8x1xf32> to vector<8x128xf32>
    %11 = arith.subf %5, %10 : vector<8x128xf32>
    %cst_4 = arith.constant dense<0xFF800000> : vector<8xf32>
    %12 = vector.multi_reduction <maximumf>, %1, %cst_4 [1] : vector<8x128xf32> to vector<8xf32>
    %13 = vector.shape_cast %12 : vector<8xf32> to vector<8x1xf32>
    %14 = vector.broadcast %13 : vector<8x1xf32> to vector<8x128xf32>
    %15 = arith.subf %1, %14 : vector<8x128xf32>
    %16 = math.exp %15 : vector<8x128xf32>
    %cst_5 = arith.constant dense<0.000000e+00> : vector<8xf32>
    %17 = vector.multi_reduction <add>, %16, %cst_5 [1] : vector<8x128xf32> to vector<8xf32>
    %18 = vector.shape_cast %17 : vector<8xf32> to vector<8x1xf32>
    %19 = math.log %18 : vector<8x1xf32>
    %20 = vector.broadcast %19 : vector<8x1xf32> to vector<8x128xf32>
    %21 = arith.subf %15, %20 : vector<8x128xf32>
    %22 = arith.addf %11, %21 : vector<8x128xf32>
    %cst_6 = arith.constant 5.000000e-01 : f32
    %23 = vector.broadcast %cst_6 : f32 to vector<8x128xf32>
    %24 = arith.mulf %23, %22 : vector<8x128xf32>
    %cst_7 = arith.constant 0.000000e+00 : f32
    %25 = vector.broadcast %cst_7 : f32 to vector<8x128xf32>
    %26 = arith.cmpf oeq, %24, %25 : vector<8x128xf32>
    %27 = math.log %24 : vector<8x128xf32>
    %28 = arith.mulf %24, %27 : vector<8x128xf32>
    %cst_8 = arith.constant 0.000000e+00 : f32
    %29 = vector.broadcast %cst_8 : f32 to vector<8x128xf32>
    %30 = arith.select %26, %29, %28 : vector<8x128xi1>, vector<8x128xf32>
    %31 = arith.mulf %24, %24 : vector<8x128xf32>
    %32 = arith.subf %30, %31 : vector<8x128xf32>
    %cst_9 = arith.constant 2.000000e+00 : f32
    %33 = vector.broadcast %cst_9 : f32 to vector<8x128xf32>
    %34 = arith.mulf %33, %32 : vector<8x128xf32>
    %35 = vector.shape_cast %34 : vector<8x128xf32> to vector<1x8x128xf32>
    %cst_10 = arith.constant dense<0.000000e+00> : vector<8x128xf32>
    %36 = vector.multi_reduction <add>, %35, %cst_10 [0] : vector<1x8x128xf32> to vector<8x128xf32>
    %c0_11 = arith.constant 0 : index
    %c0_12 = arith.constant 0 : index
    %37 = vector.load %arg3[%c0_11, %c0_12] : memref<8x128xf32, #tpu.memory_space<vmem>>, vector<8x128xf32>
    tpu.vector_store %arg3[%c0_11, %c0_12], %36 {strides = array<i32>} : memref<8x128xf32, #tpu.memory_space<vmem>>, vector<8x128xf32>,
    return
  }
  func.func @transform_0(%arg0: i32) -> (i32, i32) {
    %c0_i32 = arith.constant 0 : i32
    %c0_i32_0 = arith.constant 0 : i32
    return %arg0, %c0_i32 : i32, i32
  }
  func.func @transform_1(%arg0: i32) -> (i32, i32) {
    %c0_i32 = arith.constant 0 : i32
    %c0_i32_0 = arith.constant 0 : i32
    return %arg0, %c0_i32 : i32, i32
  }
  func.func @transform_2(%arg0: i32) -> (i32, i32) {
    %c0_i32 = arith.constant 0 : i32
    %c0_i32_0 = arith.constant 0 : i32
    return %arg0, %c0_i32 : i32, i32
  }
}

</mosaic_0001>

<llo_original>
// kernel: tpu_custom_call.1
$region0: #{tpu_custom_call.1}
  #allocation0 [shape = 'u32[]', space=smem, size = 0x4, offset = 0x4, fixed_abs, tag = 'smem constant byte address 0x4 - core index']
  #allocation1 [shape = 'u32[72,128]{1,0:T(1,128)}', space=vmem, size = 0x9000, scoped, tag = 'internal scratch']
  %s0 = inlined_call_operand.hbm [shape: f32[16,128], index: 0, kind: input, shape index: {}]
  %s1 = inlined_call_operand.hbm [shape: f32[16,128], index: 1, kind: input, shape index: {}]
  %s2 = inlined_call_operand.hbm [shape: f32[16,128], index: 2, kind: output, shape index: {}]
  %s3 = sld [smem:[#allocation0]]
  $region49: #{tpu_custom_call.1} parent=0
    _
  %s5 = ssub.s32 1, %s3
  %s6 = scalar_select 0, %s5, %s3
  $region1: #{tpu_custom_call.1} parent=0
    #allocation2 [shape = 'u8[8192]{0}', space=vmem, size = 0x2000, scoped, tag = 'input window, operand 0']
    #allocation3 [shape = 's32[2]{0}', space=sflag, size = 0x8, scoped, tag = 'scoped memory for tpu_custom_call.1']
    #allocation4 [shape = 's32[2]{0}', space=sflag, size = 0x8, scoped, tag = 'scoped memory for tpu_custom_call.1']
    #allocation5 [shape = 'u8[8192]{0}', space=vmem, size = 0x2000, scoped, tag = 'input window, operand 1']
    #allocation6 [shape = 's32[2]{0}', space=sflag, size = 0x8, scoped, tag = 'scoped memory for tpu_custom_call.1']
    #allocation7 [shape = 'u8[8192]{0}', space=vmem, size = 0x2000, scoped, tag = 'output window, operand 0']
    %7 = vsyncpa [#allocation3], 0
    %s8 = scalar_lea.sflag [#allocation3], 1
    %9 = vsyncpa %s8, 0
    %10 = vsyncpa [#allocation6], 0
    %s11 = scalar_lea.sflag [#allocation6], 1
    %12 = vsyncpa %s11, 0
    %13 = vsyncpa [#allocation4], 0
    %s14 = scalar_lea.sflag [#allocation4], 1
    %15 = vsyncpa %s14, 0
    loop: start=0, step=1, limit=4
    $region2: #{tpu_custom_call.1} parent=1 // loop_pre_header
      _
    $region3: #{tpu_custom_call.1} parent=1 // loop_header
      %s17 = sphi 0, %s21
      %p18 = scmp.ge.s32.totalorder %s17, 4
      %s27 = sphi 0, %s29
      %s30 = sphi 0, %s27
      %s31 = sphi 0, %s30
      %s47 = sphi 0, %s31
      %s53 = sphi 0, %s55
      %s56 = sphi 0, %s53
      %s57 = sphi 0, %s56
      %s73 = sphi 0, %s57
      %s79 = sphi 0, %s81
      %s82 = sphi 0, %s79
      %s83 = sphi 0, %s82
      %s99 = sphi 0, %s83
    $region4: #{tpu_custom_call.1} parent=1 // loop_header_branch
      %20 = sbr.rel (%p18) target = $region8
    $region5: #{tpu_custom_call.1} parent=1 // loop_body
      %s22 = ssub.s32 %s17, 1
      %s23 = ssub.s32 %s17, 2
      %s24 = sadd.s32 %s17, 1
      %s25 = ssub.s32 %s17, %s24
      %p26 = scmp.eq.s32.totalorder %s25, 0
      %s28 = sadd.s32 %s27, 1
      %s29 = scalar_select %p26, %s27, %s28
      %p32 = pneg %p26
      %p33 = scmp.eq.s32.totalorder %s17, 1
      %p34 = por %p32, %p33
      %p35 = scmp.ne.s32.totalorder %s27, %s30
      %p36 = scmp.eq.s32.totalorder %s17, 0
      %p37 = por %p35, %p36
      %p38 = scmp.ne.s32.totalorder %s27, %s30
      %p39 = scmp.eq.s32.totalorder %s22, 1
      %p40 = por %p38, %p39
      %p41 = scmp.ne.s32.totalorder %s30, %s31
      %p42 = scmp.eq.s32.totalorder %s22, 0
      %p43 = por %p41, %p42
      %p44 = scmp.ne.s32.totalorder %s30, %s31
      %p45 = scmp.eq.s32.totalorder %s23, 1
      %p46 = por %p44, %p45
      %p48 = scmp.ne.s32.totalorder %s31, %s47
      %p49 = scmp.eq.s32.totalorder %s23, 0
      %p50 = por %p48, %p49
      %s51 = ssub.s32 %s17, %s24
      %p52 = scmp.eq.s32.totalorder %s51, 0
      %s54 = sadd.s32 %s53, 1
      %s55 = scalar_select %p52, %s53, %s54
      %p58 = pneg %p52
      %p59 = scmp.eq.s32.totalorder %s17, 1
      %p60 = por %p58, %p59
      %p61 = scmp.ne.s32.totalorder %s53, %s56
      %p62 = scmp.eq.s32.totalorder %s17, 0
      %p63 = por %p61, %p62
      %p64 = scmp.ne.s32.totalorder %s53, %s56
      %p65 = scmp.eq.s32.totalorder %s22, 1
      %p66 = por %p64, %p65
      %p67 = scmp.ne.s32.totalorder %s56, %s57
      %p68 = scmp.eq.s32.totalorder %s22, 0
      %p69 = por %p67, %p68
      %p70 = scmp.ne.s32.totalorder %s56, %s57
      %p71 = scmp.eq.s32.totalorder %s23, 1
      %p72 = por %p70, %p71
      %p74 = scmp.ne.s32.totalorder %s57, %s73
      %p75 = scmp.eq.s32.totalorder %s23, 0
      %p76 = por %p74, %p75
      %s77 = ssub.s32 %s17, %s24
      %p78 = scmp.eq.s32.totalorder %s77, 0
      %s80 = sadd.s32 %s79, 1
      %s81 = scalar_select %p78, %s79, %s80
      %p84 = pneg %p78
      %p85 = scmp.eq.s32.totalorder %s17, 1
      %p86 = por %p84, %p85
      %p87 = scmp.ne.s32.totalorder %s79, %s82
      %p88 = scmp.eq.s32.totalorder %s17, 0
      %p89 = por %p87, %p88
      %p90 = scmp.ne.s32.totalorder %s79, %s82
      %p91 = scmp.eq.s32.totalorder %s22, 1
      %p92 = por %p90, %p91
      %p93 = scmp.ne.s32.totalorder %s82, %s83
      %p94 = scmp.eq.s32.totalorder %s22, 0
      %p95 = por %p93, %p94
      %p96 = scmp.ne.s32.totalorder %s82, %s83
      %p97 = scmp.eq.s32.totalorder %s23, 1
      %p98 = por %p96, %p97
      %p100 = scmp.ne.s32.totalorder %s83, %s99
      %p101 = scmp.eq.s32.totalorder %s23, 0
      %p102 = por %p100, %p101
      %p103 = scmp.le.s32.totalorder 1, %s17
      %p104 = scmp.lt.s32.totalorder %s17, 3
      %p105 = pnand %p103, %p104
      %p106 = pneg %p105
      // Predicated region
      $region9: #{tpu_custom_call.1} parent=5 // pred_check
        _
      $region10: #{tpu_custom_call.1} parent=5 // pred_check_branch
        %108 = sbr.rel (%p105) target = $region12
      $region11: #{tpu_custom_call.1} parent=5 // pred_region
        %s109 = ssub.s32 %s17, 1
      $region12: #{tpu_custom_call.1} parent=5 // pred_fallthru
        _
      %p110 = scmp.lt.s32.totalorder %s17, 2
      // Predicated region
      $region13: #{tpu_custom_call.1} parent=5 // pred_check
        %p111 = pneg %p110
      $region14: #{tpu_custom_call.1} parent=5 // pred_check_branch
        %113 = sbr.rel (%p111) target = $region16
      $region15: #{tpu_custom_call.1} parent=5 // pred_region
        // Predicated region
        $region17: #{tpu_custom_call.1} parent=15 // pred_check
          %p114 = pneg %p37
        $region18: #{tpu_custom_call.1} parent=15 // pred_check_branch
          %116 = sbr.rel (%p114) target = $region20
        $region19: #{tpu_custom_call.1} parent=15 // pred_region
          %s117 = sand.u32 %s27, 1
          %s118 = scalar_lea.sflag [#allocation3], %s117
          %s119 = sand.u32 %s27, 1
          %s120 = smul.addr %s119, 8
          %s121 = scalar_lea.vmem [#allocation2], %s120
          %123 = vsyncadd %s118, 0
          %s124 = smul.addr %s17, 8
          %s125 = scalar_lea.hbm %s0, %s124
          %s127 = sshll.u32 %s125, 4
          %s128 = int_to_ptr.hbm [resolvable:$true] %s127
          %s129 = sshll.u32 %s121, 4
          %s130 = int_to_ptr.vmem [resolvable:$true] %s129
          %132 = dma.hbm_to_vmem [thread:$0]  %s128, 128, %s130, %s118
        $region20: #{tpu_custom_call.1} parent=15 // pred_fallthru
          _
        // Predicated region
        $region21: #{tpu_custom_call.1} parent=15 // pred_check
          %p133 = pneg %p63
        $region22: #{tpu_custom_call.1} parent=15 // pred_check_branch
          %135 = sbr.rel (%p133) target = $region24
        $region23: #{tpu_custom_call.1} parent=15 // pred_region
          %s136 = sand.u32 %s53, 1
          %s137 = scalar_lea.sflag [#allocation6], %s136
          %s138 = sand.u32 %s53, 1
          %s139 = smul.addr %s138, 8
          %s140 = scalar_lea.vmem [#allocation5], %s139
          %142 = vsyncadd %s137, 0
          %s143 = smul.addr %s17, 8
          %s144 = scalar_lea.hbm %s1, %s143
          %s146 = sshll.u32 %s144, 4
          %s147 = int_to_ptr.hbm [resolvable:$true] %s146
          %s148 = sshll.u32 %s140, 4
          %s149 = int_to_ptr.vmem [resolvable:$true] %s148
          %151 = dma.hbm_to_vmem [thread:$0]  %s147, 128, %s149, %s137
        $region24: #{tpu_custom_call.1} parent=15 // pred_fallthru
          _
      $region16: #{tpu_custom_call.1} parent=5 // pred_fallthru
        _
      %p152 = scmp.le.s32.totalorder 1, %s17
      %p153 = scmp.lt.s32.totalorder %s17, 3
      %p154 = pnand %p152, %p153
      %p155 = pneg %p154
      // Predicated region
      $region25: #{tpu_custom_call.1} parent=5 // pred_check
        _
      $region26: #{tpu_custom_call.1} parent=5 // pred_check_branch
        %157 = sbr.rel (%p154) target = $region28
      $region27: #{tpu_custom_call.1} parent=5 // pred_region
        %s158 = ssub.s32 %s17, 1
        %s159 = sand.u32 %s30, 1
        %s160 = scalar_lea.sflag [#allocation3], %s159
        %s161 = sand.u32 %s30, 1
        %s162 = smul.addr %s161, 8
        %s163 = scalar_lea.vmem [#allocation2], %s162
        // Predicated region
        $region29: #{tpu_custom_call.1} parent=27 // pred_check
          %p164 = pneg %p43
        $region30: #{tpu_custom_call.1} parent=27 // pred_check_branch
          %166 = sbr.rel (%p164) target = $region32
        $region31: #{tpu_custom_call.1} parent=27 // pred_region
          %168 = dma.done %s160, 128
        $region32: #{tpu_custom_call.1} parent=27 // pred_fallthru
          _
        %s169 = sand.u32 %s56, 1
        %s170 = scalar_lea.sflag [#allocation6], %s169
        %s171 = sand.u32 %s56, 1
        %s172 = smul.addr %s171, 8
        %s173 = scalar_lea.vmem [#allocation5], %s172
        // Predicated region
        $region33: #{tpu_custom_call.1} parent=27 // pred_check
          %p174 = pneg %p69
        $region34: #{tpu_custom_call.1} parent=27 // pred_check_branch
          %176 = sbr.rel (%p174) target = $region36
        $region35: #{tpu_custom_call.1} parent=27 // pred_region
          %178 = dma.done %s170, 128
        $region36: #{tpu_custom_call.1} parent=27 // pred_fallthru
          _
        %s179 = sand.u32 %s30, 1
        %s180 = scalar_lea.sflag [#allocation3], %s179
        %s181 = sand.u32 %s30, 1
        %s182 = smul.addr %s181, 8
        %s183 = scalar_lea.vmem [#allocation2], %s182
        %p184 = pneg %p43
        %p185 = pneg %p40
        %s186 = sand.u32 %s56, 1
        %s187 = scalar_lea.sflag [#allocation6], %s186
        %s188 = sand.u32 %s56, 1
        %s189 = smul.addr %s188, 8
        %s190 = scalar_lea.vmem [#allocation5], %s189
        %p191 = pneg %p69
        %p192 = pneg %p66
        %p193 = pneg %p95
        %p194 = pneg %p92
        %s195 = sand.u32 %s82, 1
        %s196 = scalar_lea.sflag [#allocation4], %s195
        %s197 = sand.u32 %s82, 1
        %s198 = smul.addr %s197, 8
        %s199 = scalar_lea.vmem [#allocation7], %s198
        %v200 = vld [vmem:[%s163] sm:$0xff]
        %v201 = vld [vmem:[%s173] sm:$0xff]
        %202 = vmax.xlane.f32.xlu0 %v200
        %v203 = vpop.xlane.xlu0 %202
        %v204 = vsub.f32 %v200, %v203
        %v205 = vmul.f32 %v204, 1.442695
        %v206 = vpow.pop %v205
        %207 = vadd.xlane.f32.xlu0 %v206
        %v208 = vpop.xlane.xlu0 %207
        %v209 = vlog2.pop %v208
        %v210 = vmul.f32 %v209, 0.6931472
        %v211 = vsub.f32 %v204, %v210
        %212 = vmax.xlane.f32.xlu0 %v201
        %v213 = vpop.xlane.xlu0 %212
        %v214 = vsub.f32 %v201, %v213
        %v215 = vmul.f32 %v214, 1.442695
        %v216 = vpow.pop %v215
        %217 = vadd.xlane.f32.xlu0 %v216
        %v218 = vpop.xlane.xlu0 %217
        %v219 = vlog2.pop %v218
        %v220 = vmul.f32 %v219, 0.6931472
        %v221 = vsub.f32 %v214, %v220
        %v222 = vadd.f32 %v211, %v221
        %v223 = vmul.f32 %v222, 0.5
        %vm224 = vcmp.eq.f32.partialorder %v223, 0.0
        %v225 = vlog2.pop %v223
        %v226 = vmul.f32 %v225, 0.6931472
        %v227 = vmul.f32 %v223, %v226
        %v228 = vsel %vm224, 0.0, %v227
        %v229 = vmul.f32 %v223, %v223
        %v230 = vsub.f32 %v228, %v229
        %v231 = vmul.f32 %v230, 2.0
        %v232 = vadd.f32 %v231, 0.0
        %233 = vst [vmem:[%s199] sm:$0xff] %v232
        %s234 = sand.u32 %s82, 1
        %s235 = scalar_lea.sflag [#allocation4], %s234
        %s236 = sand.u32 %s82, 1
        %s237 = smul.addr %s236, 8
        %s238 = scalar_lea.vmem [#allocation7], %s237
        // Predicated region
        $region37: #{tpu_custom_call.1} parent=27 // pred_check
          %p239 = pneg %p92
        $region38: #{tpu_custom_call.1} parent=27 // pred_check_branch
          %241 = sbr.rel (%p239) target = $region40
        $region39: #{tpu_custom_call.1} parent=27 // pred_region
          %243 = vsyncadd %s235, 0
          %s244 = smul.addr %s22, 8
          %s245 = scalar_lea.hbm %s2, %s244
          %s247 = sshll.u32 %s238, 4
          %s248 = int_to_ptr.vmem [resolvable:$true] %s247
          %s249 = sshll.u32 %s245, 4
          %s250 = int_to_ptr.hbm [resolvable:$true] %s249
          %252 = dma.vmem_to_hbm [thread:$0]  %s248, 128, %s250, %s235
        $region40: #{tpu_custom_call.1} parent=27 // pred_fallthru
          _
      $region28: #{tpu_custom_call.1} parent=5 // pred_fallthru
        _
      %p253 = scmp.le.s32.totalorder 2, %s17
      // Predicated region
      $region41: #{tpu_custom_call.1} parent=5 // pred_check
        %p254 = pneg %p253
      $region42: #{tpu_custom_call.1} parent=5 // pred_check_branch
        %256 = sbr.rel (%p254) target = $region44
      $region43: #{tpu_custom_call.1} parent=5 // pred_region
        %s257 = ssub.s32 %s17, 2
        // Predicated region
        $region45: #{tpu_custom_call.1} parent=43 // pred_check
          %p258 = pneg %p98
        $region46: #{tpu_custom_call.1} parent=43 // pred_check_branch
          %260 = sbr.rel (%p258) target = $region48
        $region47: #{tpu_custom_call.1} parent=43 // pred_region
          %s261 = sand.u32 %s83, 1
          %s262 = scalar_lea.sflag [#allocation4], %s261
          %s263 = sand.u32 %s83, 1
          %s264 = smul.addr %s263, 8
          %s265 = scalar_lea.vmem [#allocation7], %s264
          %267 = dma.done %s262, 128
        $region48: #{tpu_custom_call.1} parent=43 // pred_fallthru
          _
      $region44: #{tpu_custom_call.1} parent=5 // pred_fallthru
        _
    $region6: #{tpu_custom_call.1} parent=1 // loop_footer
      %s21 = sadd.s32 1, %s17
    $region7: #{tpu_custom_call.1} parent=1 // loop_footer_branch
      %16 = sbr.rel target = $region3
    $region8: #{tpu_custom_call.1} parent=1 // loop_exit
      _
    %268 = vsyncpa [#allocation3], 1
    %s269 = scalar_lea.sflag [#allocation3], 1
    %270 = vsyncpa %s269, 1
    %271 = vsyncpa [#allocation6], 1
    %s272 = scalar_lea.sflag [#allocation6], 1
    %273 = vsyncpa %s272, 1
    %274 = vsyncpa [#allocation4], 1
    %s275 = scalar_lea.sflag [#allocation4], 1
    %276 = vsyncpa %s275, 1

</llo_original>
